<compile_context>
chip_gen: v7x
topology: tpu7x:2x2x1
jax: 0.10.0
libtpu: 0.0.40
codegen_flags: <defaults>
</compile_context>

<pallas_src>
import functools

import jax
import jax.numpy as jnp
import numpy as np
from jax import lax
from jax.experimental import pallas as pl
from jax.experimental.pallas import tpu as pltpu


# ~4 MiB input blocks: big enough to sit near the HBM roofline (measured
# BlockSpec sweeps reach ~85% at >=512-wide tiles), small enough that
# 2x (double buffering) + tiny output fits every generation's scoped VMEM
# (v5e 16 MiB default, v6e 32 MiB, v7x 32 MiB of 64 MiB physical).
_TARGET_BLOCK_BYTES = 4 * 1024 * 1024
_VMEM_LIMIT_BYTES = 32 * 1024 * 1024
_MAX_ROW_TILE = 32768


def _round_up(x: int, m: int) -> int:
    return ((x + m - 1) // m) * m


def _mean_full_red_kernel(x_ref, o_ref, *, inv_red):
    """Per-row mean with the whole reduction extent in one block.

    x_ref: (row_tile, red)    o_ref: (1, 1, row_tile)  (lane-dense)
    """
    # Accumulate in f32 without materializing a full f32 copy of the tile.
    s = jnp.sum(x_ref[...], axis=-1, dtype=jnp.float32)          # (row_tile,)
    o_ref[...] = jnp.broadcast_to(s * inv_red, o_ref.shape).astype(o_ref.dtype)


def _mean_tiled_red_kernel(x_ref, o_ref, acc_ref, *, inv_red, red, red_tile,
                           ragged):
    """Per-row mean with the reduction axis tiled over grid axis 1.

    x_ref:   (row_tile, red_tile)
    o_ref:   (1, 1, row_tile)              written at the last k step
    acc_ref: (1, 1, row_tile) f32 scratch  partial row sums
    """
    k = pl.program_id(1)

    @pl.when(k == 0)
    def _init():
        acc_ref[...] = jnp.zeros_like(acc_ref)

    x = x_ref[...]
    if ragged:
        # Mask columns past the true reduction extent (the last k block only
        # has `red - k*red_tile` valid columns; the rest is padding/garbage).
        col = lax.broadcasted_iota(jnp.int32, x.shape, 1) + k * red_tile
        x = jnp.where(col < red, x, jnp.zeros_like(x))

    s = jnp.sum(x, axis=-1, dtype=jnp.float32)                   # (row_tile,)
    acc_ref[...] += jnp.broadcast_to(s, acc_ref.shape)

    @pl.when(k == pl.num_programs(1) - 1)
    def _finalize():
        o_ref[...] = (acc_ref[...] * inv_red).astype(o_ref.dtype)


def _mean_last_axis(x2d, max_block_bytes=_TARGET_BLOCK_BYTES):
    """Mean over the last axis of a 2-D array -> 1-D (rows,) array."""
    rows, red = x2d.shape
    itemsize = x2d.dtype.itemsize
    inv_red = 1.0 / float(red)
    row_cap = _round_up(rows, 8)

    # Single reduction block (one streaming pass, no accumulator) whenever at
    # least an 8-row block with the full reduction extent fits the budget.
    single_red_block = (red * itemsize * 8 <= max_block_bytes) or (red <= 256)

    if single_red_block:
        budget_rows = max(8, (max_block_bytes // max(1, red * itemsize)) // 8 * 8)
        row_tile = min(row_cap, budget_rows, _MAX_ROW_TILE)
        n_row_blocks = (rows + row_tile - 1) // row_tile
        grid = (n_row_blocks,)
        kernel = functools.partial(_mean_full_red_kernel, inv_red=inv_red)
        in_specs = [pl.BlockSpec((row_tile, red), lambda i: (i, 0))]
        out_specs = pl.BlockSpec((1, 1, row_tile), lambda i: (i, 0, 0))
        scratch_shapes = []
        dim_sem = ("parallel",)
    else:
        # Reduction axis tiled: wide lane-major (multiple-of-128) blocks with
        # few rows per block (keeps DMAs big and vector stores rare — v5e has
        # a single vst slot), f32 accumulator across the "arbitrary" k axis.
        row_tile = 8
        red_tile = max(
            128,
            min(_round_up(red, 128),
                (max_block_bytes // (row_tile * itemsize)) // 128 * 128))
        n_row_blocks = (rows + row_tile - 1) // row_tile
        n_red_blocks = (red + red_tile - 1) // red_tile
        ragged = (red % red_tile) != 0
        grid = (n_row_blocks, n_red_blocks)
        kernel = functools.partial(_mean_tiled_red_kernel, inv_red=inv_red,
                                   red=red, red_tile=red_tile, ragged=ragged)
        in_specs = [pl.BlockSpec((row_tile, red_tile), lambda i, k: (i, k))]
        out_specs = pl.BlockSpec((1, 1, row_tile), lambda i, k: (i, 0, 0))
        scratch_shapes = [pltpu.VMEM((1, 1, row_tile), jnp.float32)]
        dim_sem = ("parallel", "arbitrary")

    out = pl.pallas_call(
        kernel,
        out_shape=jax.ShapeDtypeStruct((n_row_blocks, 1, row_tile), x2d.dtype),
        grid_spec=pltpu.PrefetchScalarGridSpec(
            num_scalar_prefetch=0,
            grid=grid,
            in_specs=in_specs,
            out_specs=out_specs,
            scratch_shapes=scratch_shapes,
        ),
        compiler_params=pltpu.CompilerParams(
            dimension_semantics=dim_sem,
            vmem_limit_bytes=_VMEM_LIMIT_BYTES,
        ),
        cost_estimate=pl.CostEstimate(
            flops=rows * red,
            transcendentals=0,
            bytes_accessed=rows * red * itemsize
            + n_row_blocks * row_tile * itemsize,
        ),
    )(x2d)

    # Rows were (virtually) padded up to n_row_blocks * row_tile by the ragged
    # edge block; slice the padding back off here.
    return out.reshape(n_row_blocks * row_tile)[:rows]


def mean_pallas(x, dim, keep_dim=False, max_block_bytes=_TARGET_BLOCK_BYTES):
    """Equivalent of `torch.Tensor.mean(dim, keepdim)` via Pallas TPU kernels."""
    # TODO(synk): integer input dtypes are not handled (torch.mean also rejects
    # them); only floating-point inputs are supported.
    ndim = x.ndim
    dims = (dim,) if isinstance(dim, int) else tuple(dim)
    dims = tuple(sorted(d % ndim for d in dims))
    if not dims:
        return x
    kept = tuple(a for a in range(ndim) if a not in dims)

    # Move the reduced axes to the end and flatten to (rows, red).  For the
    # common global-average-pool case (NCHW, dim=[2, 3]) the permutation is the
    # identity so this is a free view; otherwise the transpose costs one extra
    # HBM round trip outside the kernel.
    perm = kept + dims
    kept_shape = tuple(x.shape[a] for a in kept)
    red = int(np.prod([x.shape[a] for a in dims]))
    rows = int(np.prod(kept_shape)) if kept_shape else 1
    xt = x if perm == tuple(range(ndim)) else jnp.transpose(x, perm)
    x2d = xt.reshape(rows, red)

    out = _mean_last_axis(x2d, max_block_bytes=max_block_bytes)   # (rows,)
    out = out.reshape(kept_shape)
    if keep_dim:
        full_shape = tuple(1 if a in dims else x.shape[a] for a in range(ndim))
        out = out.reshape(full_shape)
    return out


if __name__ == "__main__":
    key = jax.random.PRNGKey(0)

    # 1) Canonical usage: global average pooling over NCHW spatial dims.
    x = jax.random.normal(key, (2, 4, 16, 16), dtype=jnp.float32)
    out = jax.block_until_ready(mean_pallas(x, dim=[2, 3], keep_dim=False))
    ref = jnp.mean(x, axis=(2, 3), keepdims=False)
    np.testing.assert_allclose(np.asarray(out), np.asarray(ref),
                               rtol=1e-6, atol=1e-6)
    assert out.shape == ref.shape and out.dtype == ref.dtype

    # 2) keep_dim=True with a non-trailing reduced axis (wrapper transpose).
    out2 = jax.block_until_ready(mean_pallas(x, dim=1, keep_dim=True))
    ref2 = jnp.mean(x, axis=1, keepdims=True)
    np.testing.assert_allclose(np.asarray(out2), np.asarray(ref2),
                               rtol=1e-6, atol=1e-6)
    assert out2.shape == ref2.shape

    # 3) Rows not divisible by 8 / by the row tile (ragged edge block; padded
    #    output rows sliced off in the wrapper).
    x3 = jax.random.normal(jax.random.PRNGKey(1), (3, 5, 16, 16),
                           dtype=jnp.float32)
    out3 = jax.block_until_ready(mean_pallas(x3, dim=[2, 3]))
    ref3 = jnp.mean(x3, axis=(2, 3))
    np.testing.assert_allclose(np.asarray(out3), np.asarray(ref3),
                               rtol=1e-6, atol=1e-6)

    # 4) Force the reduction-tiled (accumulator) kernel on a small shape by
    #    shrinking the block budget; reduction extent and rows both ragged.
    x4 = jax.random.normal(jax.random.PRNGKey(2), (2, 3, 16, 23),
                           dtype=jnp.float32)
    out4 = jax.block_until_ready(
        mean_pallas(x4, dim=[2, 3], max_block_bytes=4096))
    ref4 = jnp.mean(x4, axis=(2, 3))
    np.testing.assert_allclose(np.asarray(out4), np.asarray(ref4),
                               rtol=1e-5, atol=1e-6)

    print("KERNEL_OK")
</pallas_src>

<mosaic_0001>
module attributes {stable_mosaic.version = 11 : i64} {
  func.func @_mean_full_red_kernel(%arg0: i32, %arg1: memref<8x256xf32, #tpu.memory_space<vmem>>, %arg2: memref<1x1x8xf32, #tpu.memory_space<vmem>>) attributes {dimension_semantics = [#tpu.dimension_semantics<parallel>], iteration_bounds = array<i64: 1>, scalar_prefetch = 0 : i64, scratch_operands = 0 : i64, tpu.core_type = #tpu.core_type<tc>, window_params = [{transform_indices = @transform_0, window_bounds = array<i64: 8, 256>}, {transform_indices = @transform_1, window_bounds = array<i64: 1, 1, 8>}]} {
    %c0 = arith.constant 0 : index
    %c0_0 = arith.constant 0 : index
    %0 = vector.load %arg1[%c0, %c0_0] : memref<8x256xf32, #tpu.memory_space<vmem>>, vector<8x256xf32>
    %cst = arith.constant dense<0.000000e+00> : vector<8xf32>
    %1 = vector.multi_reduction <add>, %0, %cst [1] : vector<8x256xf32> to vector<8xf32>
    %cst_1 = arith.constant 3.906250e-03 : f32
    %2 = vector.broadcast %cst_1 : f32 to vector<8xf32>
    %3 = arith.mulf %1, %2 : vector<8xf32>
    %4 = vector.shape_cast %3 : vector<8xf32> to vector<1x1x8xf32>
    %c0_2 = arith.constant 0 : index
    %c0_3 = arith.constant 0 : index
    %c0_4 = arith.constant 0 : index
    %5 = vector.load %arg2[%c0_2, %c0_3, %c0_4] : memref<1x1x8xf32, #tpu.memory_space<vmem>>, vector<1x1x8xf32>
    tpu.vector_store %arg2[%c0_2, %c0_3, %c0_4], %4 {strides = array<i32>} : memref<1x1x8xf32, #tpu.memory_space<vmem>>, vector<1x1x8xf32>,
    return
  }
  func.func @transform_0(%arg0: i32) -> (i32, i32) {
    %c0_i32 = arith.constant 0 : i32
    %c0_i32_0 = arith.constant 0 : i32
    return %arg0, %c0_i32 : i32, i32
  }
  func.func @transform_1(%arg0: i32) -> (i32, i32, i32) {
    %c0_i32 = arith.constant 0 : i32
    %c0_i32_0 = arith.constant 0 : i32
    %c0_i32_1 = arith.constant 0 : i32
    return %arg0, %c0_i32, %c0_i32_0 : i32, i32, i32
  }
}

</mosaic_0001>

<llo_original>
// kernel: tpu_custom_call.1
$region0: #{tpu_custom_call.1}
  #allocation0 [shape = 'u32[]', space=smem, size = 0x4, offset = 0x4, fixed_abs, tag = 'smem constant byte address 0x4 - core index']
  #allocation1 [shape = 'u32[144,128]{1,0:T(1,128)}', space=vmem, size = 0x12000, scoped, tag = 'internal scratch']
  %s0 = inlined_call_operand.hbm [shape: f32[8,256], index: 0, kind: input, shape index: {}]
  %s1 = inlined_call_operand.hbm [shape: f32[1,1,8], index: 1, kind: output, shape index: {}]
  %s2 = sld [smem:[#allocation0]]
  $region18: #{tpu_custom_call.1} parent=0
    _
  %s4 = ssub.s32 1, %s2
  %s5 = scalar_select 0, %s4, %s2
  $region1: #{tpu_custom_call.1} parent=0
    #allocation2 [shape = 'u8[8192]{0}', space=vmem, size = 0x2000, scoped, tag = 'input window, operand 0, single buffered']
    #allocation3 [shape = 's32[1]{0}', space=sflag, size = 0x4, scoped, tag = 'scoped memory for tpu_custom_call.1']
    #allocation4 [shape = 's32[1]{0}', space=sflag, size = 0x4, scoped, tag = 'scoped memory for tpu_custom_call.1']
    #allocation5 [shape = 'u8[512]{0}', space=vmem, size = 0x400, scoped, tag = 'output window, operand 0, single buffered']
    %6 = vsyncpa [#allocation3], 0
    %7 = vsyncpa [#allocation4], 0
    // Predicated region
    $region2: #{tpu_custom_call.1} parent=1 // pred_check
      _
    $region3: #{tpu_custom_call.1} parent=1 // pred_check_branch
      %9 = sbr.rel (0) target = $region5
    $region4: #{tpu_custom_call.1} parent=1 // pred_region
      %s11 = ssub.s32 256, 256
      %12 = vsyncadd [#allocation3], %s11
      %s14 = sshll.u32 [#allocation2], 4
      %s15 = int_to_ptr.vmem [resolvable:$true] %s14
      %17 = dma.hbm_to_vmem [thread:$0]  %s0, 256, %s15, [#allocation3]
    $region5: #{tpu_custom_call.1} parent=1 // pred_fallthru
      _
    // Predicated region
    $region6: #{tpu_custom_call.1} parent=1 // pred_check
      _
    $region7: #{tpu_custom_call.1} parent=1 // pred_check_branch
      %19 = sbr.rel (0) target = $region9
    $region8: #{tpu_custom_call.1} parent=1 // pred_region
      %20 = dma.done [#allocation3], 256
    $region9: #{tpu_custom_call.1} parent=1 // pred_fallthru
      _
    %v21 = vld [vmem:[#allocation2] sm:$0xff]
    %v22 = vld [vmem:[#allocation2 + $0x8] sm:$0xff]
    %v23 = vadd.f32 %v21, %v22
    %24 = vadd.xlane.f32.xlu0 %v23
    %v25 = vpop.xlane.xlu0 %24
    %v26 = vmul.f32 %v25, 0.00390625
    %v28 = vlaneseq
    %v29 = vand.u32 %v28, 127
    %v30 = vlaneseq
    %v31 = vshrl.u32 %v30, 7
    %v32 = vsub.s32 %v29, %v31
    %v33 = vrot.slane %v26, %v32
    %vm35 = vcmask 57344
    %36 = vst.msk [vmem:[#allocation5] sm:$0x1] %vm35, %v33
    // Predicated region
    $region10: #{tpu_custom_call.1} parent=1 // pred_check
      _
    $region11: #{tpu_custom_call.1} parent=1 // pred_check_branch
      %38 = sbr.rel (0) target = $region13
    $region12: #{tpu_custom_call.1} parent=1 // pred_region
      %s40 = ssub.s32 16, 16
      %41 = vsyncadd [#allocation4], %s40
      %s43 = sshll.u32 [#allocation5], 4
      %s44 = int_to_ptr.vmem [resolvable:$true] %s43
      %46 = dma.vmem_to_hbm [thread:$0]  %s44, 16, %s1, [#allocation4]
    $region13: #{tpu_custom_call.1} parent=1 // pred_fallthru
      _
    // Predicated region
    $region14: #{tpu_custom_call.1} parent=1 // pred_check
      _
    $region15: #{tpu_custom_call.1} parent=1 // pred_check_branch
      %48 = sbr.rel (0) target = $region17
    $region16: #{tpu_custom_call.1} parent=1 // pred_region
      %49 = dma.done [#allocation4], 16
    $region17: #{tpu_custom_call.1} parent=1 // pred_fallthru
      _
    %50 = vsyncpa [#allocation3], 1
    %51 = vsyncpa [#allocation4], 1

</llo_original>
